<compile_context>
chip_gen: v7x
topology: tpu7x:2x2x1
jax: 0.10.0
libtpu: 0.0.40
codegen_flags: <defaults>
</compile_context>

<pallas_src>
import functools

import jax
import jax.numpy as jnp
import numpy as np
from jax.experimental import pallas as pl
from jax.experimental.pallas import tpu as pltpu


def _detect_level_kernel(x_ref, w_ref, b_ref, scale_ref, kind_ref, gxy_ref,
                         o_ref, *, na, no_pad, fuse):
    """One (batch, hw-tile) step: fused 1x1 conv over ALL anchors (single MXU
    matmul, HW lane-dense) + sigmoid box decode with pre-folded constants."""
    x = x_ref[0]                      # (Cin, THW)  storage dtype (bf16 / f32)
    w = w_ref[...]                    # (C_pad, Cin) same storage dtype

    # 1x1 conv over all anchors == one channel matmul, f32 accumulation.
    v = jnp.dot(w, x, preferred_element_type=jnp.float32)   # (C_pad, THW) f32
    v = v + b_ref[...]                # bias column (C_pad, 1)
    s = jax.nn.sigmoid(v)             # EUP, f32

    kind = kind_ref[...]              # (C_pad, 1) int32: 0=x, 1=y, 2=w/h, 3=raw
    gxo = gxy_ref[0:1, :]             # (1, THW) f32 = (grid_x - 0.5) * stride
    gyo = gxy_ref[1:2, :]             # (1, THW) f32 = (grid_y - 0.5) * stride

    goff = jnp.where(kind == 0, gxo, jnp.where(kind == 1, gyo, 0.0))
    t = jnp.where(kind == 2, s * s, s)
    out = t * scale_ref[...] + goff   # (C_pad, THW) f32

    if fuse:
        # Emit the final (na, THW, no_pad) layout directly: na small XLU
        # transposes of (no_pad multiple-of-8, THW multiple-of-128) tiles.
        for a in range(na):
            o_ref[0, a] = out[a * no_pad:(a + 1) * no_pad, :].T.astype(o_ref.dtype)
    else:
        o_ref[0] = out.astype(o_ref.dtype)    # lane-dense (C_pad, THW) store


def _pick_hw_tile(hw, max_tile=512):
    """Lane-dense HW tile.  Multiple of 128 whenever HW >= 128 (ragged tail is
    masked via the cdiv grid); splits into >= 2 tiles per batch when free."""
    max_tile = max(128, (max_tile // 128) * 128)
    if hw >= 128:
        t = min(max_tile, (hw // 128) * 128)
        if t == hw and hw % 256 == 0:
            t = hw // 2               # >= 2 grid steps per batch (v7x megacore)
        return t
    return hw                         # tiny level: single full-HW block


def detect_level(x_flat, w_pad, b_col, scale_col, kind_col, gxy,
                 *, na, no_pad, fuse_transpose, max_hw_tile=512,
                 out_dtype=jnp.float32):
    """x_flat: (B, Cin, HW).  Returns decoded predictions as either
    (B, na*no_pad, HW) [lane-dense, wrapper permute] or
    (B, na, HW, no_pad) [final layout, wrapper reshape is free]."""
    B, Cin, HW = x_flat.shape
    C_pad = na * no_pad
    thw = _pick_hw_tile(HW, max_hw_tile)
    fuse = bool(fuse_transpose) and thw % 128 == 0   # need aligned transposes
    n_t = pl.cdiv(HW, thw)

    if fuse:
        out_shape = jax.ShapeDtypeStruct((B, na, HW, no_pad), out_dtype)
        out_spec = pl.BlockSpec((1, na, thw, no_pad), lambda b, t: (b, 0, t, 0))
    else:
        out_shape = jax.ShapeDtypeStruct((B, C_pad, HW), out_dtype)
        out_spec = pl.BlockSpec((1, C_pad, thw), lambda b, t: (b, 0, t))

    # Explicit VMEM budget: double-buffered x/w/out blocks + f32 temporaries.
    item = jnp.dtype(x_flat.dtype).itemsize
    est = 2 * (Cin * thw * item + C_pad * Cin * item + C_pad * thw * 4
               + 3 * C_pad * 4 + 2 * thw * 4)
    vmem_limit = int(min(64 * 2**20, max(16 * 2**20, 3 * est)))

    kernel = functools.partial(_detect_level_kernel, na=na, no_pad=no_pad,
                               fuse=fuse)
    return pl.pallas_call(
        kernel,
        out_shape=out_shape,
        grid_spec=pltpu.PrefetchScalarGridSpec(
            num_scalar_prefetch=0,
            grid=(B, n_t),
            in_specs=[
                pl.BlockSpec((1, Cin, thw), lambda b, t: (b, 0, t)),  # x tile
                pl.BlockSpec((C_pad, Cin), lambda b, t: (0, 0)),      # weight
                pl.BlockSpec((C_pad, 1), lambda b, t: (0, 0)),        # bias
                pl.BlockSpec((C_pad, 1), lambda b, t: (0, 0)),        # scale
                pl.BlockSpec((C_pad, 1), lambda b, t: (0, 0)),        # kind
                pl.BlockSpec((2, thw), lambda b, t: (0, t)),          # grid off
            ],
            out_specs=out_spec,
        ),
        compiler_params=pltpu.CompilerParams(
            dimension_semantics=("parallel", "parallel"),
            vmem_limit_bytes=vmem_limit),
    )(x_flat, w_pad, b_col, scale_col, kind_col, gxy)


def _prep_level_constants(w_conv, b_conv, anchor_grid, stride, na, no, no_pad,
                          ny, nx, in_dtype):
    """Host-side constant folding for one pyramid level."""
    C = na * no
    C_pad = na * no_pad
    Cin = w_conv.shape[1]
    stride = float(stride)

    # Destination row of original channel (anchor a, channel c) after padding.
    dst = (np.arange(C) // no) * no_pad + (np.arange(C) % no)

    w2 = w_conv[:, :, 0, 0].astype(in_dtype)                       # (C, Cin)
    w_pad = jnp.zeros((C_pad, Cin), in_dtype).at[dst].set(w2)
    b_col = jnp.zeros((C_pad, 1), jnp.float32).at[dst, 0].set(
        b_conv.astype(jnp.float32))

    # Per-row decode kind: 0 = x, 1 = y, 2 = w/h, 3 = raw sigmoid (conf/cls/pad)
    ch = np.arange(C_pad) % no_pad
    kind = np.where(ch == 0, 0, np.where(ch == 1, 1, np.where(ch < 4, 2, 3)))
    kind = np.where(ch < no, kind, 3)
    kind_col = jnp.asarray(kind.reshape(C_pad, 1), jnp.int32)

    # Per-row scale: xy -> 2*stride, wh -> 4*anchor_{w,h}, rest -> 1.
    ag = anchor_grid.reshape(na, 2).astype(jnp.float32)
    scale = jnp.ones((na, no_pad), jnp.float32)
    scale = scale.at[:, 0].set(2.0 * stride).at[:, 1].set(2.0 * stride)
    scale = scale.at[:, 2].set(4.0 * ag[:, 0]).at[:, 3].set(4.0 * ag[:, 1])
    scale_col = scale.reshape(C_pad, 1)

    # Spatial grid with (g - 0.5) * stride pre-folded, packed as one (2, HW).
    p = np.arange(ny * nx)
    gxy = jnp.asarray(np.stack([((p % nx) - 0.5) * stride,
                                ((p // nx) - 0.5) * stride],
                               0).astype(np.float32))
    return w_pad, b_col, scale_col, kind_col, gxy


def yolov7_detect(all_x_nchw, weights, biases, anchor_grids, strides, na, no,
                  *, in_dtype=jnp.bfloat16, fuse_transpose=None,
                  max_hw_tile=512):
    """Pallas implementation of _YoloV7Detector.forward.

    in_dtype: storage dtype for the feature maps / conv weights fed to the MXU
      (bf16 halves the dominant HBM read; decode is always f32).
    fuse_transpose: None = auto; fuse the output permute into the kernel only
      when `no` is large enough for lane-reasonable stores (real heads).
    """
    no_pad = -(-no // 8) * 8          # channels-per-anchor padded to 8 sublanes
    if fuse_transpose is None:
        fuse_transpose = no_pad >= 64
    outs = []
    for i, x in enumerate(all_x_nchw):
        B, Cin, ny, nx = x.shape
        HW = ny * nx
        consts = _prep_level_constants(weights[i], biases[i], anchor_grids[i],
                                       strides[i], na, no, no_pad, ny, nx,
                                       in_dtype)
        # Free reshape (no transpose): NCHW -> (B, Cin, HW), HW row-major, so
        # it matches the (ny, nx) flattening of the reference permute.
        x_flat = x.reshape(B, Cin, HW).astype(in_dtype)
        out = detect_level(x_flat, *consts, na=na, no_pad=no_pad,
                           fuse_transpose=fuse_transpose,
                           max_hw_tile=max_hw_tile)
        if out.ndim == 4:
            # Fused path: (B, na, HW, no_pad) is already anchor-outer,
            # spatial-inner, channel-last; the reshape is free and the pad
            # slice fuses with the final concat under jit.
            out = out.reshape(B, na * HW, no_pad)[..., :no]
        else:
            # Lane-dense path: small-output permute in the wrapper, exactly
            # the PyTorch view/permute/view chain.
            out = out.reshape(B, na, no_pad, HW)[:, :, :no, :]
            out = out.transpose(0, 1, 3, 2).reshape(B, na * HW, no)
        outs.append(out)
    return jnp.concatenate(outs, 1)


def yolov7_detect_reference(all_x_nchw, weights, biases, anchor_grids, strides,
                            na, no):
    """Pure-JAX f32 reference mirroring the PyTorch forward, for verification."""
    z = []
    for i, x in enumerate(all_x_nchw):
        B, Cin, ny, nx = x.shape
        w = weights[i][:, :, 0, 0]
        v = jnp.einsum('bchw,oc->bohw', x, w) + biases[i][None, :, None, None]
        v = v.reshape(B, na, no, ny, nx).transpose(0, 1, 3, 4, 2)
        yv, xv = jnp.meshgrid(jnp.arange(ny), jnp.arange(nx), indexing='ij')
        grid = jnp.stack((xv, yv), 2).reshape(1, 1, ny, nx, 2).astype(jnp.float32)
        y = jax.nn.sigmoid(v)
        xy = (y[..., 0:2] * 2.0 - 0.5 + grid) * strides[i]
        wh = (y[..., 2:4] * 2.0) ** 2 * anchor_grids[i]
        cat = jnp.concatenate((xy, wh, y[..., 4:]), -1)
        z.append(cat.reshape(B, -1, no))
    return jnp.concatenate(z, 1)


if __name__ == "__main__":
    # Small synthetic config consistent with the module (input 160x160-ish).
    B = 2
    nl = 3                    # num_layers
    na = 3                    # num_anchors
    nc = 3                    # num classes
    no = nc + 5               # 8
    m_out_channel = na * no   # 24
    m_in_channels = [16, 32, 64]
    strides = [8.0, 16.0, 32.0]
    # Level 0 exercises the ragged cdiv tail (HW=400, tile 384) and the fused
    # final-layout path; levels 1/2 exercise the tiny full-HW fallback.
    spatial = [(20, 20), (10, 10), (5, 5)]   # (ny, nx) per level

    key = jax.random.PRNGKey(0)
    keys = jax.random.split(key, 4 * nl)

    all_x, weights, biases, anchor_grids = [], [], [], []
    for i in range(nl):
        ny, nx = spatial[i]
        all_x.append(jax.random.normal(keys[4 * i + 0],
                                       (B, m_in_channels[i], ny, nx), jnp.float32))
        weights.append(0.1 * jax.random.normal(keys[4 * i + 1],
                                               (m_out_channel, m_in_channels[i], 1, 1),
                                               jnp.float32))
        biases.append(0.1 * jax.random.normal(keys[4 * i + 2],
                                              (m_out_channel,), jnp.float32))
        anchor_grids.append(
            jnp.abs(jax.random.normal(keys[4 * i + 3], (1, na, 1, 1, 2),
                                      jnp.float32)) * 10.0 + 1.0)

    ref = jax.block_until_ready(
        yolov7_detect_reference(all_x, weights, biases, anchor_grids, strides, na, no))
    total_preds = sum(na * ny * nx for (ny, nx) in spatial)
    assert ref.shape == (B, total_preds, no), ref.shape

    # f32 storage, lane-dense output + wrapper permute: strict check.
    out_f32 = jax.block_until_ready(
        yolov7_detect(all_x, weights, biases, anchor_grids, strides, na, no,
                      in_dtype=jnp.float32, fuse_transpose=False))
    assert out_f32.shape == (B, total_preds, no), out_f32.shape
    np.testing.assert_allclose(np.asarray(out_f32), np.asarray(ref),
                               rtol=2e-3, atol=2e-3)

    # f32 storage with the fused final-layout output (the path used for real
    # heads, no=nc+5~85); the 128-aligned level fuses, tiny levels fall back.
    out_fused = jax.block_until_ready(
        yolov7_detect(all_x, weights, biases, anchor_grids, strides, na, no,
                      in_dtype=jnp.float32, fuse_transpose=True))
    assert out_fused.shape == (B, total_preds, no), out_fused.shape
    np.testing.assert_allclose(np.asarray(out_fused), np.asarray(ref),
                               rtol=2e-3, atol=2e-3)

    # Default path: bf16 feature-map / weight storage (halved HBM read) with
    # f32 accumulation + f32 decode: loose check.
    out_bf16 = jax.block_until_ready(
        yolov7_detect(all_x, weights, biases, anchor_grids, strides, na, no))
    assert out_bf16.shape == (B, total_preds, no), out_bf16.shape
    np.testing.assert_allclose(np.asarray(out_bf16), np.asarray(ref),
                               rtol=5e-2, atol=5e-1)

    print("KERNEL_OK")
</pallas_src>

<mosaic_0001>
module attributes {stable_mosaic.version = 11 : i64} {
  func.func @_detect_level_kernel(%arg0: i32, %arg1: i32, %arg2: memref<1x16x384xf32, #tpu.memory_space<vmem>>, %arg3: memref<24x16xf32, #tpu.memory_space<vmem>>, %arg4: memref<24x1xf32, #tpu.memory_space<vmem>>, %arg5: memref<24x1xf32, #tpu.memory_space<vmem>>, %arg6: memref<24x1xi32, #tpu.memory_space<vmem>>, %arg7: memref<2x384xf32, #tpu.memory_space<vmem>>, %arg8: memref<1x24x384xf32, #tpu.memory_space<vmem>>) attributes {dimension_semantics = [#tpu.dimension_semantics<parallel>, #tpu.dimension_semantics<parallel>], iteration_bounds = array<i64: 2, 2>, scalar_prefetch = 0 : i64, scratch_operands = 0 : i64, tpu.core_type = #tpu.core_type<tc>, window_params = [{transform_indices = @transform_0, window_bounds = array<i64: 1, 16, 384>}, {pipeline_mode = #tpu.pipeline_mode<synchronous>, transform_indices = @transform_1, window_bounds = array<i64: 24, 16>}, {pipeline_mode = #tpu.pipeline_mode<synchronous>, transform_indices = @transform_2, window_bounds = array<i64: 24, 1>}, {pipeline_mode = #tpu.pipeline_mode<synchronous>, transform_indices = @transform_3, window_bounds = array<i64: 24, 1>}, {pipeline_mode = #tpu.pipeline_mode<synchronous>, transform_indices = @transform_4, window_bounds = array<i64: 24, 1>}, {transform_indices = @transform_5, window_bounds = array<i64: 2, 384>}, {transform_indices = @transform_6, window_bounds = array<i64: 1, 24, 384>}]} {
    %c0 = arith.constant 0 : index
    %c0_0 = arith.constant 0 : index
    %c0_1 = arith.constant 0 : index
    %0 = vector.load %arg2[%c0, %c0_0, %c0_1] : memref<1x16x384xf32, #tpu.memory_space<vmem>>, vector<1x16x384xf32>
    %1 = vector.shape_cast %0 : vector<1x16x384xf32> to vector<16x384xf32>
    %c0_2 = arith.constant 0 : index
    %c0_3 = arith.constant 0 : index
    %2 = vector.load %arg3[%c0_2, %c0_3] : memref<24x16xf32, #tpu.memory_space<vmem>>, vector<24x16xf32>
    %cst = arith.constant dense<0.000000e+00> : vector<24x384xf32>
    %3 = tpu.matmul %2, %1, %cst {dimension_numbers = #tpu.dot_dimension_numbers<[1], [0], [0], [1], [0, 0, 1, 1], [], []>} : vector<24x16xf32>, vector<16x384xf32>, vector<24x384xf32> -> vector<24x384xf32>
    %c0_4 = arith.constant 0 : index
    %c0_5 = arith.constant 0 : index
    %4 = vector.load %arg4[%c0_4, %c0_5] : memref<24x1xf32, #tpu.memory_space<vmem>>, vector<24x1xf32>
    %5 = vector.broadcast %4 : vector<24x1xf32> to vector<24x384xf32>
    %6 = arith.addf %3, %5 : vector<24x384xf32>
    %7 = arith.negf %6 : vector<24x384xf32>
    %8 = math.exp %7 : vector<24x384xf32>
    %cst_6 = arith.constant 1.000000e+00 : f32
    %9 = vector.broadcast %cst_6 : f32 to vector<24x384xf32>
    %10 = arith.addf %9, %8 : vector<24x384xf32>
    %11 = arith.divf %9, %10 : vector<24x384xf32>
    %c0_7 = arith.constant 0 : index
    %c0_8 = arith.constant 0 : index
    %12 = vector.load %arg6[%c0_7, %c0_8] : memref<24x1xi32, #tpu.memory_space<vmem>>, vector<24x1xi32>
    %c0_9 = arith.constant 0 : index
    %c0_10 = arith.constant 0 : index
    %13 = vector.load %arg7[%c0_9, %c0_10] : memref<2x384xf32, #tpu.memory_space<vmem>>, vector<1x384xf32>
    %c1 = arith.constant 1 : index
    %c0_11 = arith.constant 0 : index
    %14 = vector.load %arg7[%c1, %c0_11] : memref<2x384xf32, #tpu.memory_space<vmem>>, vector<1x384xf32>
    %c0_i32 = arith.constant 0 : i32
    %15 = vector.broadcast %c0_i32 : i32 to vector<24x1xi32>
    %16 = arith.cmpi eq, %12, %15 : vector<24x1xi32>
    %c1_i32 = arith.constant 1 : i32
    %17 = vector.broadcast %c1_i32 : i32 to vector<24x1xi32>
    %18 = arith.cmpi eq, %12, %17 : vector<24x1xi32>
    %cst_12 = arith.constant 0.000000e+00 : f32
    %19 = vector.shape_cast %18 : vector<24x1xi1> to vector<24x1xi1>
    %20 = vector.broadcast %19 : vector<24x1xi1> to vector<24x384xi1>
    %21 = vector.shape_cast %14 : vector<1x384xf32> to vector<1x384xf32>
    %22 = vector.broadcast %21 : vector<1x384xf32> to vector<24x384xf32>
    %23 = vector.broadcast %cst_12 : f32 to vector<24x384xf32>
    %24 = arith.select %20, %22, %23 : vector<24x384xi1>, vector<24x384xf32>
    %25 = vector.shape_cast %16 : vector<24x1xi1> to vector<24x1xi1>
    %26 = vector.broadcast %25 : vector<24x1xi1> to vector<24x384xi1>
    %27 = vector.shape_cast %13 : vector<1x384xf32> to vector<1x384xf32>
    %28 = vector.broadcast %27 : vector<1x384xf32> to vector<24x384xf32>
    %29 = arith.select %26, %28, %24 : vector<24x384xi1>, vector<24x384xf32>
    %c2_i32 = arith.constant 2 : i32
    %30 = vector.broadcast %c2_i32 : i32 to vector<24x1xi32>
    %31 = arith.cmpi eq, %12, %30 : vector<24x1xi32>
    %32 = arith.mulf %11, %11 : vector<24x384xf32>
    %33 = vector.shape_cast %31 : vector<24x1xi1> to vector<24x1xi1>
    %34 = vector.broadcast %33 : vector<24x1xi1> to vector<24x384xi1>
    %35 = arith.select %34, %32, %11 : vector<24x384xi1>, vector<24x384xf32>
    %c0_13 = arith.constant 0 : index
    %c0_14 = arith.constant 0 : index
    %36 = vector.load %arg5[%c0_13, %c0_14] : memref<24x1xf32, #tpu.memory_space<vmem>>, vector<24x1xf32>
    %37 = vector.broadcast %36 : vector<24x1xf32> to vector<24x384xf32>
    %38 = arith.mulf %35, %37 : vector<24x384xf32>
    %39 = arith.addf %38, %29 : vector<24x384xf32>
    %c0_15 = arith.constant 0 : index
    %c0_16 = arith.constant 0 : index
    %c0_17 = arith.constant 0 : index
    %40 = vector.load %arg8[%c0_15, %c0_16, %c0_17] : memref<1x24x384xf32, #tpu.memory_space<vmem>>, vector<1x24x384xf32>
    %41 = vector.shape_cast %40 : vector<1x24x384xf32> to vector<24x384xf32>
    %42 = vector.shape_cast %39 : vector<24x384xf32> to vector<1x24x384xf32>
    tpu.vector_store %arg8[%c0_15, %c0_16, %c0_17], %42 {strides = array<i32>} : memref<1x24x384xf32, #tpu.memory_space<vmem>>, vector<1x24x384xf32>,
    return
  }
  func.func @transform_0(%arg0: i32, %arg1: i32) -> (i32, i32, i32) {
    %c0_i32 = arith.constant 0 : i32
    %c0_i32_0 = arith.constant 0 : i32
    return %arg0, %c0_i32, %arg1 : i32, i32, i32
  }
  func.func @transform_1(%arg0: i32, %arg1: i32) -> (i32, i32) {
    %c0_i32 = arith.constant 0 : i32
    %c0_i32_0 = arith.constant 0 : i32
    %c0_i32_1 = arith.constant 0 : i32
    return %c0_i32, %c0_i32_0 : i32, i32
  }
  func.func @transform_2(%arg0: i32, %arg1: i32) -> (i32, i32) {
    %c0_i32 = arith.constant 0 : i32
    %c0_i32_0 = arith.constant 0 : i32
    %c0_i32_1 = arith.constant 0 : i32
    return %c0_i32, %c0_i32_0 : i32, i32
  }
  func.func @transform_3(%arg0: i32, %arg1: i32) -> (i32, i32) {
    %c0_i32 = arith.constant 0 : i32
    %c0_i32_0 = arith.constant 0 : i32
    %c0_i32_1 = arith.constant 0 : i32
    return %c0_i32, %c0_i32_0 : i32, i32
  }
  func.func @transform_4(%arg0: i32, %arg1: i32) -> (i32, i32) {
    %c0_i32 = arith.constant 0 : i32
    %c0_i32_0 = arith.constant 0 : i32
    %c0_i32_1 = arith.constant 0 : i32
    return %c0_i32, %c0_i32_0 : i32, i32
  }
  func.func @transform_5(%arg0: i32, %arg1: i32) -> (i32, i32) {
    %c0_i32 = arith.constant 0 : i32
    %c0_i32_0 = arith.constant 0 : i32
    return %c0_i32, %arg1 : i32, i32
  }
  func.func @transform_6(%arg0: i32, %arg1: i32) -> (i32, i32, i32) {
    %c0_i32 = arith.constant 0 : i32
    %c0_i32_0 = arith.constant 0 : i32
    return %arg0, %c0_i32, %arg1 : i32, i32, i32
  }
}

</mosaic_0001>

<llo_original>
// kernel: tpu_custom_call.1
$region0: #{tpu_custom_call.1}
  #allocation0 [shape = 'u32[]', space=smem, size = 0x4, offset = 0x4, fixed_abs, tag = 'smem constant byte address 0x4 - core index']
  #allocation1 [shape = 'u32[144,128]{1,0:T(1,128)}', space=vmem, size = 0x12000, scoped, tag = 'internal scratch']
  %s0 = inlined_call_operand.hbm [shape: f32[2,16,400], index: 0, kind: input, shape index: {}]
  %s1 = inlined_call_operand.vmem [shape: f32[24,16], index: 1, kind: input, shape index: {}]
  %s2 = inlined_call_operand.vmem [shape: f32[24,1], index: 2, kind: input, shape index: {}]
  %s3 = inlined_call_operand.vmem [shape: f32[24,1], index: 3, kind: input, shape index: {}]
  %s4 = inlined_call_operand.vmem [shape: s32[24,1], index: 4, kind: input, shape index: {}]
  %s5 = inlined_call_operand.vmem [shape: f32[2,400], index: 5, kind: input, shape index: {}]
  %s6 = inlined_call_operand.hbm [shape: f32[2,24,400], index: 6, kind: output, shape index: {}]
  %s7 = sld [smem:[#allocation0]]
  $region61: #{tpu_custom_call.1} parent=0
    _
  %s9 = ssub.s32 1, %s7
  %s10 = scalar_select 0, %s9, %s7
  $region1: #{tpu_custom_call.1} parent=0
    #allocation2 [shape = 'u8[49152]{0}', space=vmem, size = 0xc000, scoped, tag = 'input window, operand 0']
    #allocation3 [shape = 's32[2]{0}', space=sflag, size = 0x8, scoped, tag = 'scoped memory for tpu_custom_call.1']
    #allocation4 [shape = 's32[2]{0}', space=sflag, size = 0x8, scoped, tag = 'scoped memory for tpu_custom_call.1']
    #allocation5 [shape = 'u8[73728]{0}', space=vmem, size = 0x12000, scoped, tag = 'output window, operand 0']
    %11 = vsyncpa [#allocation3], 0
    %s12 = scalar_lea.sflag [#allocation3], 1
    %13 = vsyncpa %s12, 0
    %14 = vsyncpa [#allocation4], 0
    %s15 = scalar_lea.sflag [#allocation4], 1
    %16 = vsyncpa %s15, 0
    loop: start=0, step=1, limit=6
    $region2: #{tpu_custom_call.1} parent=1 // loop_pre_header
      _
    $region3: #{tpu_custom_call.1} parent=1 // loop_header
      %s18 = sphi 0, %s22
      %p19 = scmp.ge.s32.totalorder %s18, 6
      %s25 = sphi 0, %s37
      %s26 = sphi 0, %s33
      %s27 = sphi 0, %s25
      %s28 = sphi 0, %s26
      %s29 = sphi 0, %s27
      %s30 = sphi 0, %s28
      %s42 = sphi 0, %s44
      %s45 = sphi 0, %s42
      %s46 = sphi 0, %s45
      %s62 = sphi 0, %s46
      %s66 = sphi 0, %s66
      %s68 = sphi 0, %s66
      %s69 = sphi 0, %s68
      %s83 = sphi 0, %s69
      %s87 = sphi 0, %s87
      %s89 = sphi 0, %s87
      %s90 = sphi 0, %s89
      %s104 = sphi 0, %s90
      %s108 = sphi 0, %s108
      %s110 = sphi 0, %s108
      %s111 = sphi 0, %s110
      %s125 = sphi 0, %s111
      %s129 = sphi 0, %s129
      %s131 = sphi 0, %s129
      %s132 = sphi 0, %s131
      %s146 = sphi 0, %s132
      %s152 = sphi 0, %s154
      %s155 = sphi 0, %s152
      %s156 = sphi 0, %s155
      %s172 = sphi 0, %s156
      %s180 = sphi 0, %s182
      %s183 = sphi 0, %s180
      %s184 = sphi 0, %s183
      %s200 = sphi 0, %s184
    $region4: #{tpu_custom_call.1} parent=1 // loop_header_branch
      %21 = sbr.rel (%p19) target = $region8
    $region5: #{tpu_custom_call.1} parent=1 // loop_body
      %s23 = ssub.s32 %s18, 1
      %s24 = ssub.s32 %s18, 2
      %s31 = sadd.s32 1, %s26
      %p32 = scmp.ge.s32.totalorder %s31, 2
      %s33 = scalar_select %p32, 0, %s31
      %s34 = sadd.s32 1, %s25
      %s35 = scalar_select %p32, %s34, %s25
      %p36 = scmp.ge.s32.totalorder %s35, 2
      %s37 = scalar_select %p36, 0, %s35
      %s38 = ssub.s32 %s25, %s37
      %s39 = ssub.s32 %s26, %s33
      %s40 = sor.u32 %s38, %s39
      %p41 = scmp.eq.s32.totalorder %s40, 0
      %s43 = sadd.s32 %s42, 1
      %s44 = scalar_select %p41, %s42, %s43
      %p47 = pneg %p41
      %p48 = scmp.eq.s32.totalorder %s18, 3
      %p49 = por %p47, %p48
      %p50 = scmp.ne.s32.totalorder %s42, %s45
      %p51 = scmp.eq.s32.totalorder %s18, 0
      %p52 = por %p50, %p51
      %p53 = scmp.ne.s32.totalorder %s42, %s45
      %p54 = scmp.eq.s32.totalorder %s23, 3
      %p55 = por %p53, %p54
      %p56 = scmp.ne.s32.totalorder %s45, %s46
      %p57 = scmp.eq.s32.totalorder %s23, 0
      %p58 = por %p56, %p57
      %p59 = scmp.ne.s32.totalorder %s45, %s46
      %p60 = scmp.eq.s32.totalorder %s24, 3
      %p61 = por %p59, %p60
      %p63 = scmp.ne.s32.totalorder %s46, %s62
      %p64 = scmp.eq.s32.totalorder %s24, 0
      %p65 = por %p63, %p64
      %s67 = sadd.s32 %s66, 1
      %p70 = scmp.eq.s32.totalorder %s18, 3
      %p71 = scmp.ne.s32.totalorder %s66, %s68
      %p72 = scmp.eq.s32.totalorder %s18, 0
      %p73 = por %p71, %p72
      %p74 = scmp.ne.s32.totalorder %s66, %s68
      %p75 = scmp.eq.s32.totalorder %s23, 3
      %p76 = por %p74, %p75
      %p77 = scmp.ne.s32.totalorder %s68, %s69
      %p78 = scmp.eq.s32.totalorder %s23, 0
      %p79 = por %p77, %p78
      %p80 = scmp.ne.s32.totalorder %s68, %s69
      %p81 = scmp.eq.s32.totalorder %s24, 3
      %p82 = por %p80, %p81
      %p84 = scmp.ne.s32.totalorder %s69, %s83
      %p85 = scmp.eq.s32.totalorder %s24, 0
      %p86 = por %p84, %p85
      %s88 = sadd.s32 %s87, 1
      %p91 = scmp.eq.s32.totalorder %s18, 3
      %p92 = scmp.ne.s32.totalorder %s87, %s89
      %p93 = scmp.eq.s32.totalorder %s18, 0
      %p94 = por %p92, %p93
      %p95 = scmp.ne.s32.totalorder %s87, %s89
      %p96 = scmp.eq.s32.totalorder %s23, 3
      %p97 = por %p95, %p96
      %p98 = scmp.ne.s32.totalorder %s89, %s90
      %p99 = scmp.eq.s32.totalorder %s23, 0
      %p100 = por %p98, %p99
      %p101 = scmp.ne.s32.totalorder %s89, %s90
      %p102 = scmp.eq.s32.totalorder %s24, 3
      %p103 = por %p101, %p102
      %p105 = scmp.ne.s32.totalorder %s90, %s104
      %p106 = scmp.eq.s32.totalorder %s24, 0
      %p107 = por %p105, %p106
      %s109 = sadd.s32 %s108, 1
      %p112 = scmp.eq.s32.totalorder %s18, 3
      %p113 = scmp.ne.s32.totalorder %s108, %s110
      %p114 = scmp.eq.s32.totalorder %s18, 0
      %p115 = por %p113, %p114
      %p116 = scmp.ne.s32.totalorder %s108, %s110
      %p117 = scmp.eq.s32.totalorder %s23, 3
      %p118 = por %p116, %p117
      %p119 = scmp.ne.s32.totalorder %s110, %s111
      %p120 = scmp.eq.s32.totalorder %s23, 0
      %p121 = por %p119, %p120
      %p122 = scmp.ne.s32.totalorder %s110, %s111
      %p123 = scmp.eq.s32.totalorder %s24, 3
      %p124 = por %p122, %p123
      %p126 = scmp.ne.s32.totalorder %s111, %s125
      %p127 = scmp.eq.s32.totalorder %s24, 0
      %p128 = por %p126, %p127
      %s130 = sadd.s32 %s129, 1
      %p133 = scmp.eq.s32.totalorder %s18, 3
      %p134 = scmp.ne.s32.totalorder %s129, %s131
      %p135 = scmp.eq.s32.totalorder %s18, 0
      %p136 = por %p134, %p135
      %p137 = scmp.ne.s32.totalorder %s129, %s131
      %p138 = scmp.eq.s32.totalorder %s23, 3
      %p139 = por %p137, %p138
      %p140 = scmp.ne.s32.totalorder %s131, %s132
      %p141 = scmp.eq.s32.totalorder %s23, 0
      %p142 = por %p140, %p141
      %p143 = scmp.ne.s32.totalorder %s131, %s132
      %p144 = scmp.eq.s32.totalorder %s24, 3
      %p145 = por %p143, %p144
      %p147 = scmp.ne.s32.totalorder %s132, %s146
      %p148 = scmp.eq.s32.totalorder %s24, 0
      %p149 = por %p147, %p148
      %s150 = ssub.s32 %s26, %s33
      %p151 = scmp.eq.s32.totalorder %s150, 0
      %s153 = sadd.s32 %s152, 1
      %s154 = scalar_select %p151, %s152, %s153
      %p157 = pneg %p151
      %p158 = scmp.eq.s32.totalorder %s18, 3
      %p159 = por %p157, %p158
      %p160 = scmp.ne.s32.totalorder %s152, %s155
      %p161 = scmp.eq.s32.totalorder %s18, 0
      %p162 = por %p160, %p161
      %p163 = scmp.ne.s32.totalorder %s152, %s155
      %p164 = scmp.eq.s32.totalorder %s23, 3
      %p165 = por %p163, %p164
      %p166 = scmp.ne.s32.totalorder %s155, %s156
      %p167 = scmp.eq.s32.totalorder %s23, 0
      %p168 = por %p166, %p167
      %p169 = scmp.ne.s32.totalorder %s155, %s156
      %p170 = scmp.eq.s32.totalorder %s24, 3
      %p171 = por %p169, %p170
      %p173 = scmp.ne.s32.totalorder %s156, %s172
      %p174 = scmp.eq.s32.totalorder %s24, 0
      %p175 = por %p173, %p174
      %s176 = ssub.s32 %s25, %s37
      %s177 = ssub.s32 %s26, %s33
      %s178 = sor.u32 %s176, %s177
      %p179 = scmp.eq.s32.totalorder %s178, 0
      %s181 = sadd.s32 %s180, 1
      %s182 = scalar_select %p179, %s180, %s181
      %p185 = pneg %p179
      %p186 = scmp.eq.s32.totalorder %s18, 3
      %p187 = por %p185, %p186
      %p188 = scmp.ne.s32.totalorder %s180, %s183
      %p189 = scmp.eq.s32.totalorder %s18, 0
      %p190 = por %p188, %p189
      %p191 = scmp.ne.s32.totalorder %s180, %s183
      %p192 = scmp.eq.s32.totalorder %s23, 3
      %p193 = por %p191, %p192
      %p194 = scmp.ne.s32.totalorder %s183, %s184
      %p195 = scmp.eq.s32.totalorder %s23, 0
      %p196 = por %p194, %p195
      %p197 = scmp.ne.s32.totalorder %s183, %s184
      %p198 = scmp.eq.s32.totalorder %s24, 3
      %p199 = por %p197, %p198
      %p201 = scmp.ne.s32.totalorder %s184, %s200
      %p202 = scmp.eq.s32.totalorder %s24, 0
      %p203 = por %p201, %p202
      %p204 = scmp.le.s32.totalorder 1, %s18
      %p205 = scmp.lt.s32.totalorder %s18, 5
      %p206 = pnand %p204, %p205
      %p207 = pneg %p206
      // Predicated region
      $region9: #{tpu_custom_call.1} parent=5 // pred_check
        _
      $region10: #{tpu_custom_call.1} parent=5 // pred_check_branch
        %209 = sbr.rel (%p206) target = $region12
      $region11: #{tpu_custom_call.1} parent=5 // pred_region
        %s210 = ssub.s32 %s18, 1
        // Predicated region
        $region13: #{tpu_custom_call.1} parent=11 // pred_check
          %p211 = pneg %p79
        $region14: #{tpu_custom_call.1} parent=11 // pred_check_branch
          %213 = sbr.rel (%p211) target = $region16
        $region15: #{tpu_custom_call.1} parent=11 // pred_region
          _
        $region16: #{tpu_custom_call.1} parent=11 // pred_fallthru
          _
        // Predicated region
        $region17: #{tpu_custom_call.1} parent=11 // pred_check
          %p214 = pneg %p100
        $region18: #{tpu_custom_call.1} parent=11 // pred_check_branch
          %216 = sbr.rel (%p214) target = $region20
        $region19: #{tpu_custom_call.1} parent=11 // pred_region
          _
        $region20: #{tpu_custom_call.1} parent=11 // pred_fallthru
          _
        // Predicated region
        $region21: #{tpu_custom_call.1} parent=11 // pred_check
          %p217 = pneg %p121
        $region22: #{tpu_custom_call.1} parent=11 // pred_check_branch
          %219 = sbr.rel (%p217) target = $region24
        $region23: #{tpu_custom_call.1} parent=11 // pred_region
          _
        $region24: #{tpu_custom_call.1} parent=11 // pred_fallthru
          _
        // Predicated region
        $region25: #{tpu_custom_call.1} parent=11 // pred_check
          %p220 = pneg %p142
        $region26: #{tpu_custom_call.1} parent=11 // pred_check_branch
          %222 = sbr.rel (%p220) target = $region28
        $region27: #{tpu_custom_call.1} parent=11 // pred_region
          _
        $region28: #{tpu_custom_call.1} parent=11 // pred_fallthru
          _
      $region12: #{tpu_custom_call.1} parent=5 // pred_fallthru
        _
      %p223 = scmp.lt.s32.totalorder %s18, 4
      // Predicated region
      $region29: #{tpu_custom_call.1} parent=5 // pred_check
        %p224 = pneg %p223
      $region30: #{tpu_custom_call.1} parent=5 // pred_check_branch
        %226 = sbr.rel (%p224) target = $region32
      $region31: #{tpu_custom_call.1} parent=5 // pred_region
        // Predicated region
        $region33: #{tpu_custom_call.1} parent=31 // pred_check
          %p227 = pneg %p52
        $region34: #{tpu_custom_call.1} parent=31 // pred_check_branch
          %229 = sbr.rel (%p227) target = $region36
        $region35: #{tpu_custom_call.1} parent=31 // pred_region
          %s230 = sand.u32 %s42, 1
          %s231 = scalar_lea.sflag [#allocation3], %s230
          %s232 = sand.u32 %s42, 1
          %s233 = smul.addr %s232, 48
          %s234 = scalar_lea.vmem [#allocation2], %s233
          %s235 = smul.u32 3, %s26
          %s236 = ssub.s32 4, %s235
          %p237 = scmp.lt.s32.totalorder %s236, 3
          %s238 = scalar_select %p237, %s236, 3
          %s239 = smul.u32 256, %s238
          %s241 = ssub.s32 768, %s239
          %242 = vsyncadd %s231, %s241
          %p243 = scmp.ne.s32.totalorder 0, %s239
          %s244 = smul.addr %s25, 8
          %s245 = sadd.s32 %s235, %s244
          %s246 = smul.addr %s245, 128
          %s247 = scalar_lea.hbm %s0, %s246
          %s248 = smul.u32 %s238, 8
          %s249 = smul.u32 %s248, 2
          %s250 = sshll.u32 %s234, 4
          %s251 = int_to_ptr.vmem [resolvable:$true] %s250
          %s252 = sshll.u32 %s249, 4
          %256 = dma.hbm_to_vmem [thread:$0]  (%p243), %s247, %s252, %s251, %s231, 512, 384, %s248
        $region36: #{tpu_custom_call.1} parent=31 // pred_fallthru
          _
        // Predicated region
        $region37: #{tpu_custom_call.1} parent=31 // pred_check
          %p257 = pneg %p162
        $region38: #{tpu_custom_call.1} parent=31 // pred_check_branch
          %259 = sbr.rel (%p257) target = $region40
        $region39: #{tpu_custom_call.1} parent=31 // pred_region
          %s260 = smul.u32 3, %s26
          %s261 = ssub.s32 4, %s260
          %p262 = scmp.lt.s32.totalorder %s261, 3
          %s263 = scalar_select %p262, %s261, 3
          %s264 = smul.u32 32, %s263
          %p265 = scmp.lt.s32.totalorder %s260, 3
          %s266 = scalar_select %p265, %s260, 3
          %s267 = smul.addr %s266, 2
          %s268 = scalar_lea.vmem %s5, %s267
          %s269 = smul.u32 3, %s26
          %s270 = ssub.s32 4, %s269
          %p271 = scmp.lt.s32.totalorder %s270, 3
          %s272 = scalar_select %p271, %s270, 3
          %s273 = smul.u32 32, %s272
        $region40: #{tpu_custom_call.1} parent=31 // pred_fallthru
          _
      $region32: #{tpu_custom_call.1} parent=5 // pred_fallthru
        _
      %p274 = scmp.le.s32.totalorder 1, %s18
      %p275 = scmp.lt.s32.totalorder %s18, 5
      %p276 = pnand %p274, %p275
      %p277 = pneg %p276
      // Predicated region
      $region41: #{tpu_custom_call.1} parent=5 // pred_check
        _
      $region42: #{tpu_custom_call.1} parent=5 // pred_check_branch
        %279 = sbr.rel (%p276) target = $region44
      $region43: #{tpu_custom_call.1} parent=5 // pred_region
        %s280 = ssub.s32 %s18, 1
        %s281 = sand.u32 %s45, 1
        %s282 = scalar_lea.sflag [#allocation3], %s281
        %s283 = sand.u32 %s45, 1
        %s284 = smul.addr %s283, 48
        %s285 = scalar_lea.vmem [#allocation2], %s284
        // Predicated region
        $region45: #{tpu_custom_call.1} parent=43 // pred_check
          %p286 = pneg %p58
        $region46: #{tpu_custom_call.1} parent=43 // pred_check_branch
          %288 = sbr.rel (%p286) target = $region48
        $region47: #{tpu_custom_call.1} parent=43 // pred_region
          %289 = dma.done %s282, 768
        $region48: #{tpu_custom_call.1} parent=43 // pred_fallthru
          _
        %s290 = sand.u32 %s45, 1
        %s291 = scalar_lea.sflag [#allocation3], %s290
        %s292 = sand.u32 %s45, 1
        %s293 = smul.addr %s292, 48
        %s294 = scalar_lea.vmem [#allocation2], %s293
        %p295 = pneg %p58
        %p296 = pneg %p55
        %p297 = pneg %p79
        %p298 = pneg %p76
        %p299 = pneg %p100
        %p300 = pneg %p97
        %p301 = pneg %p121
        %p302 = pneg %p118
        %p303 = pneg %p142
        %p304 = pneg %p139
        %s305 = smul.u32 3, %s28
        %s306 = ssub.s32 4, %s305
        %p307 = scmp.lt.s32.totalorder %s306, 3
        %s308 = scalar_select %p307, %s306, 3
        %s309 = smul.u32 32, %s308
        %p310 = scmp.lt.s32.totalorder %s305, 3
        %s311 = scalar_select %p310, %s305, 3
        %s312 = smul.addr %s311, 2
        %s313 = scalar_lea.vmem %s5, %s312
        %p314 = pneg %p168
        %p315 = pneg %p165
        %p316 = pneg %p196
        %p317 = pneg %p193
        %s318 = sand.u32 %s183, 1
        %s319 = scalar_lea.sflag [#allocation4], %s318
        %s320 = sand.u32 %s183, 1
        %s321 = smul.addr %s320, 72
        %s322 = scalar_lea.vmem [#allocation5], %s321
        %s323 = smul.u32 3, %s28
        %s324 = ssub.s32 4, %s323
        %p325 = scmp.lt.s32.totalorder %s324, 3
        %s326 = scalar_select %p325, %s324, 3
        %s327 = smul.u32 256, %s326
        %s328 = smul.u32 3, %s28
        %s329 = ssub.s32 4, %s328
        %p330 = scmp.lt.s32.totalorder %s329, 3
        %s331 = scalar_select %p330, %s329, 3
        %s332 = smul.u32 32, %s331
        %p333 = scmp.lt.s32.totalorder %s328, 3
        %s334 = scalar_select %p333, %s328, 3
        %s335 = smul.addr %s334, 2
        %s336 = scalar_lea.vmem %s5, %s335
        %s337 = smul.u32 3, %s28
        %s338 = ssub.s32 4, %s337
        %p339 = scmp.lt.s32.totalorder %s338, 3
        %s340 = scalar_select %p339, %s338, 3
        %s341 = smul.u32 32, %s340
        %s342 = smul.u32 3, %s28
        %s343 = ssub.s32 4, %s342
        %p344 = scmp.lt.s32.totalorder %s343, 3
        %s345 = scalar_select %p344, %s343, 3
        %s346 = smul.u32 384, %s345
        %v347 = vld [vmem:[%s285] sm:$0xff]
        %v348 = vld [vmem:[%s285 + $0x8] sm:$0xff]
        %v349 = vld [vmem:[%s285 + $0x10] sm:$0xff]
        %v350 = vld [vmem:[%s285 + $0x18] sm:$0xff]
        %v351 = vld [vmem:[%s285 + $0x20] sm:$0xff]
        %v352 = vld [vmem:[%s285 + $0x28] sm:$0xff]
        %v353 = vld [vmem:[%s1] sm:$0xff]
        %v354 = vld [vmem:[%s1 + $0x8] sm:$0xff]
        %v355 = vld [vmem:[%s1 + $0x10] sm:$0xff]
        %v356 = vld [vmem:[%s2] sm:$0xff]
        %v357 = vld [vmem:[%s2 + $0x8] sm:$0xff]
        %v358 = vld [vmem:[%s2 + $0x10] sm:$0xff]
        %360 = vset.pattern.permute.xlu0 0
        %361 = vperm.xlu0 %360, %v356
        %v362 = vpop.permute.xlu0 %361
        %365 = vset.pattern.permute.xlu0 0
        %366 = vperm.xlu0 %365, %v357
        %v367 = vpop.permute.xlu0 %366
        %370 = vset.pattern.permute.xlu0 0
        %371 = vperm.xlu0 %370, %v358
        %v372 = vpop.permute.xlu0 %371
        %vm374 = vcmask 130048
        %v376 = vsel %vm374, %v353, 0
        %v379 = vsel %vm374, %v354, 0
        %v382 = vsel %vm374, %v355, 0
        %384 = vmatprep.subr.mxu0 %v348
        %385 = vmatpush1.msra.mxu0 %v347
        %386 = vmatprep.subr.mxu0 %v351
        %387 = vmatpush1.msra.mxu0 %v350
        %388 = vmatprep.subr.mxu0 0.0
        %389 = vmatpush1.msra.mxu0 0.0
        %390 = vmatprep.subr.mxu0 0.0
        %391 = vmatpush1.msra.mxu0 0.0
        %392 = vmatprep.subr.mxu0 0.0
        %393 = vmatpush1.msra.mxu0 0.0
        %394 = vmatprep.subr.mxu0 0.0
        %395 = vmatpush1.msra.mxu0 0.0
        %396 = vmatprep.subr.mxu0 0.0
        %397 = vmatpush1.msra.mxu0 0.0
        %398 = vmatprep.subr.mxu0 0.0
        %399 = vmatpush1.msra.mxu0 0.0
        %400 = vmatprep.subr.mxu0 0.0
        %401 = vmatpush1.msra.mxu0 0.0
        %402 = vmatprep.subr.mxu0 0.0
        %403 = vmatpush1.msra.mxu0 0.0
        %404 = vmatprep.subr.mxu0 0.0
        %405 = vmatpush1.msra.mxu0 0.0
        %406 = vmatprep.subr.mxu0 0.0
        %407 = vmatpush1.msra.mxu0 0.0
        %408 = vmatprep.subr.mxu0 0.0
        %409 = vmatpush1.msra.mxu0 0.0
        %410 = vmatprep.subr.mxu0 0.0
        %411 = vmatpush1.msra.mxu0 0.0
        %412 = vmatprep.subr.mxu0 0.0
        %413 = vmatpush1.msra.mxu0 0.0
        %414 = vmatprep.subr.mxu0 0.0
        %415 = vmatpush1.msra.mxu0 0.0
        %416 = vmatprep.subr.mxu0 0.0
        %417 = vmatpush1.msra.mxu0 0.0
        %418 = vmatprep.subr.mxu0 0.0
        %419 = vmatpush1.msra.mxu0 0.0
        %420 = vmatprep.subr.mxu0 0.0
        %421 = vmatpush1.msra.mxu0 0.0
        %422 = vmatprep.subr.mxu0 0.0
        %423 = vmatpush1.msra.mxu0 0.0
        %424 = vmatprep.subr.mxu0 0.0
        %425 = vmatpush1.msra.mxu0 0.0
        %426 = vmatprep.subr.mxu0 0.0
        %427 = vmatpush1.msra.mxu0 0.0
        %428 = vmatprep.subr.mxu0 0.0
        %429 = vmatpush1.msra.mxu0 0.0
        %430 = vmatprep.subr.mxu0 0.0
        %431 = vmatpush1.msra.mxu0 0.0
        %432 = vmatprep.subr.mxu0 0.0
        %433 = vmatpush1.msra.mxu0 0.0
        %434 = vmatprep.subr.mxu0 0.0
        %435 = vmatpush1.msra.mxu0 0.0
        %436 = vmatprep.subr.mxu0 0.0
        %437 = vmatpush1.msra.mxu0 0.0
        %438 = vmatprep.subr.mxu0 0.0
        %439 = vmatpush1.msra.mxu0 0.0
        %440 = vmatprep.subr.mxu0 0.0
        %441 = vmatpush1.msra.mxu0 0.0
        %442 = vmatprep.subr.mxu0 0.0
        %443 = vmatpush1.msra.mxu0 0.0
        %444 = vmatprep.subr.mxu0 0.0
        %445 = vmatpush1.msra.mxu0 0.0
        %446 = vmatprep.subr.mxu0 0.0
        %447 = vmatpush1.msra.mxu0 0.0
        %448 = vmatprep.mubr.f32.mxu0 0.0
        %449 = vmatmul.mubr.f32.gmra.mrb[0].mxu0 %v376
        %v450 = vpop.f32.mrb[0].mxu0
        %v451 = vadd.f32 %v362, %v450
        %v452 = vpop.f32.mrb[0].mxu0
        %v453 = vadd.f32 %v362, %v452
        %454 = vmatprep.mubr.f32.mxu0 0.0
        %455 = vmatmul.mubr.f32.gmra.mrb[0].mxu0 %v379
        %v456 = vpop.f32.mrb[0].mxu0
        %v457 = vadd.f32 %v367, %v456
        %v458 = vpop.f32.mrb[0].mxu0
        %v459 = vadd.f32 %v367, %v458
        %460 = vmatprep.mubr.f32.mxu0 0.0
        %461 = vmatmul.mubr.f32.gmra.mrb[0].mxu0 %v382
        %v462 = vpop.f32.mrb[0].mxu0
        %v463 = vadd.f32 %v372, %v462
        %v464 = vpop.f32.mrb[0].mxu0
        %v465 = vadd.f32 %v372, %v464
        %466 = vdwg.mxu0
        %467 = vmatprep.subr.mxu0 0.0
        %468 = vmatpush1.msra.mxu0 %v349
        %469 = vmatprep.subr.mxu0 0.0
        %470 = vmatpush1.msra.mxu0 %v352
        %471 = vmatprep.subr.mxu0 0.0
        %472 = vmatpush1.msra.mxu0 0.0
        %473 = vmatprep.subr.mxu0 0.0
        %474 = vmatpush1.msra.mxu0 0.0
        %475 = vmatprep.subr.mxu0 0.0
        %476 = vmatpush1.msra.mxu0 0.0
        %477 = vmatprep.subr.mxu0 0.0
        %478 = vmatpush1.msra.mxu0 0.0
        %479 = vmatprep.subr.mxu0 0.0
        %480 = vmatpush1.msra.mxu0 0.0
        %481 = vmatprep.subr.mxu0 0.0
        %482 = vmatpush1.msra.mxu0 0.0
        %483 = vmatprep.subr.mxu0 0.0
        %484 = vmatpush1.msra.mxu0 0.0
        %485 = vmatprep.subr.mxu0 0.0
        %486 = vmatpush1.msra.mxu0 0.0
        %487 = vmatprep.subr.mxu0 0.0
        %488 = vmatpush1.msra.mxu0 0.0
        %489 = vmatprep.subr.mxu0 0.0
        %490 = vmatpush1.msra.mxu0 0.0
        %491 = vmatprep.subr.mxu0 0.0
        %492 = vmatpush1.msra.mxu0 0.0
        %493 = vmatprep.subr.mxu0 0.0
        %494 = vmatpush1.msra.mxu0 0.0
        %495 = vmatprep.subr.mxu0 0.0
        %496 = vmatpush1.msra.mxu0 0.0
        %497 = vmatprep.subr.mxu0 0.0
        %498 = vmatpush1.msra.mxu0 0.0
        %499 = vmatprep.subr.mxu0 0.0
        %500 = vmatpush1.msra.mxu0 0.0
        %501 = vmatprep.subr.mxu0 0.0
        %502 = vmatpush1.msra.mxu0 0.0
        %503 = vmatprep.subr.mxu0 0.0
        %504 = vmatpush1.msra.mxu0 0.0
        %505 = vmatprep.subr.mxu0 0.0
        %506 = vmatpush1.msra.mxu0 0.0
        %507 = vmatprep.subr.mxu0 0.0
        %508 = vmatpush1.msra.mxu0 0.0
        %509 = vmatprep.subr.mxu0 0.0
        %510 = vmatpush1.msra.mxu0 0.0
        %511 = vmatprep.subr.mxu0 0.0
        %512 = vmatpush1.msra.mxu0 0.0
        %513 = vmatprep.subr.mxu0 0.0
        %514 = vmatpush1.msra.mxu0 0.0
        %515 = vmatprep.subr.mxu0 0.0
        %516 = vmatpush1.msra.mxu0 0.0
        %517 = vmatprep.subr.mxu0 0.0
        %518 = vmatpush1.msra.mxu0 0.0
        %519 = vmatprep.subr.mxu0 0.0
        %520 = vmatpush1.msra.mxu0 0.0
        %521 = vmatprep.subr.mxu0 0.0
        %522 = vmatpush1.msra.mxu0 0.0
        %523 = vmatprep.subr.mxu0 0.0
        %524 = vmatpush1.msra.mxu0 0.0
        %525 = vmatprep.subr.mxu0 0.0
        %526 = vmatpush1.msra.mxu0 0.0
        %527 = vmatprep.subr.mxu0 0.0
        %528 = vmatpush1.msra.mxu0 0.0
        %529 = vmatprep.subr.mxu0 0.0
        %530 = vmatpush1.msra.mxu0 0.0
        %531 = vmatprep.mubr.f32.mxu0 0.0
        %532 = vmatmul.mubr.f32.gmra.mrb[0].mxu0 %v376
        %v533 = vpop.f32.mrb[0].mxu0
        %v534 = vadd.f32 %v362, %v533
        %v535 = vpop.f32.mrb[0].mxu0
        %536 = vmatprep.mubr.f32.mxu0 0.0
        %537 = vmatmul.mubr.f32.gmra.mrb[0].mxu0 %v379
        %v538 = vpop.f32.mrb[0].mxu0
        %v539 = vadd.f32 %v367, %v538
        %v540 = vpop.f32.mrb[0].mxu0
        %541 = vmatprep.mubr.f32.mxu0 0.0
        %542 = vmatmul.mubr.f32.gmra.mrb[0].mxu0 %v382
        %v543 = vpop.f32.mrb[0].mxu0
        %v544 = vadd.f32 %v372, %v543
        %v545 = vpop.f32.mrb[0].mxu0
        %546 = vdwg.mxu0
        %v547 = vxor.u32 %v451, 2147483648
        %v548 = vxor.u32 %v453, 2147483648
        %v549 = vxor.u32 %v534, 2147483648
        %v550 = vxor.u32 %v457, 2147483648
        %v551 = vxor.u32 %v459, 2147483648
        %v552 = vxor.u32 %v539, 2147483648
        %v553 = vxor.u32 %v463, 2147483648
        %v554 = vxor.u32 %v465, 2147483648
        %v555 = vxor.u32 %v544, 2147483648
        %v556 = vmul.f32 %v547, 1.442695
        %v557 = vpow.pop %v556
        %v558 = vmul.f32 %v548, 1.442695
        %v559 = vpow.pop %v558
        %v560 = vmul.f32 %v549, 1.442695
        %v561 = vpow.pop %v560
        %v562 = vmul.f32 %v550, 1.442695
        %v563 = vpow.pop %v562
        %v564 = vmul.f32 %v551, 1.442695
        %v565 = vpow.pop %v564
        %v566 = vmul.f32 %v552, 1.442695
        %v567 = vpow.pop %v566
        %v568 = vmul.f32 %v553, 1.442695
        %v569 = vpow.pop %v568
        %v570 = vmul.f32 %v554, 1.442695
        %v571 = vpow.pop %v570
        %v572 = vmul.f32 %v555, 1.442695
        %v573 = vpow.pop %v572
        %v574 = vadd.f32 %v557, 1.0
        %v575 = vadd.f32 %v559, 1.0
        %v576 = vadd.f32 %v561, 1.0
        %v577 = vadd.f32 %v563, 1.0
        %v578 = vadd.f32 %v565, 1.0
        %v579 = vadd.f32 %v567, 1.0
        %v580 = vadd.f32 %v569, 1.0
        %v581 = vadd.f32 %v571, 1.0
        %v582 = vadd.f32 %v573, 1.0
        %v583 = vrcp.pop %v574
        %v584 = vmul.f32 1.0, %v583
        %v585 = vrcp.pop %v575
        %v586 = vmul.f32 1.0, %v585
        %v587 = vrcp.pop %v576
        %v588 = vmul.f32 1.0, %v587
        %v589 = vrcp.pop %v577
        %v590 = vmul.f32 1.0, %v589
        %v591 = vrcp.pop %v578
        %v592 = vmul.f32 1.0, %v591
        %v593 = vrcp.pop %v579
        %v594 = vmul.f32 1.0, %v593
        %v595 = vrcp.pop %v580
        %v596 = vmul.f32 1.0, %v595
        %v597 = vrcp.pop %v581
        %v598 = vmul.f32 1.0, %v597
        %v599 = vrcp.pop %v582
        %v600 = vmul.f32 1.0, %v599
        %v601 = vld [vmem:[%s4] sm:$0xff]
        %v602 = vld [vmem:[%s4 + $0x8] sm:$0xff]
        %v603 = vld [vmem:[%s4 + $0x10] sm:$0xff]
        %v604 = vld [vmem:[%s336] ss:$2 sm:$0x7]
        %s605 = scalar_lea.vmem %s336, 1
        %v606 = vld [vmem:[%s605] ss:$2 sm:$0x7]
        %vm607 = vcmp.eq.s32.totalorder %v601, 0
        %vm608 = vcmp.eq.s32.totalorder %v602, 0
        %vm609 = vcmp.eq.s32.totalorder %v603, 0
        %vm610 = vcmp.eq.s32.totalorder %v601, 1
        %vm611 = vcmp.eq.s32.totalorder %v602, 1
        %vm612 = vcmp.eq.s32.totalorder %v603, 1
        %v613 = vsel %vm610, 1, 0
        %v614 = vsel %vm611, 1, 0
        %v615 = vsel %vm612, 1, 0
        %616 = vset.pattern.permute.xlu0 0
        %617 = vperm.xlu0 %616, %v613
        %v618 = vpop.permute.xlu0 %617
        %619 = vset.pattern.permute.xlu0 0
        %620 = vperm.xlu0 %619, %v614
        %v621 = vpop.permute.xlu0 %620
        %622 = vset.pattern.permute.xlu0 0
        %623 = vperm.xlu0 %622, %v615
        %v624 = vpop.permute.xlu0 %623
        %vm625 = vcmp.eq.s32.totalorder %v618, 1
        %vm626 = vcmp.eq.s32.totalorder %v621, 1
        %vm627 = vcmp.eq.s32.totalorder %v624, 1
        %v629 = vlaneseq
        %v630 = vshrl.u32 %v629, 7
        %v631 = vsub.s32 0, %v630
        %v632 = vrot.slane %v606, %v631
        %v633 = vlaneseq
        %v634 = vshrl.u32 %v633, 7
        %v635 = vsub.s32 1, %v634
        %v636 = vrot.slane %v606, %v635
        %v637 = vlaneseq
        %v638 = vshrl.u32 %v637, 7
        %v639 = vsub.s32 2, %v638
        %v640 = vrot.slane %v606, %v639
        %v644 = vsel %vm625, %v632, 0.0
        %v645 = vsel %vm625, %v636, 0.0
        %v646 = vsel %vm625, %v640, 0.0
        %v647 = vsel %vm626, %v632, 0.0
        %v648 = vsel %vm626, %v636, 0.0
        %v649 = vsel %vm626, %v640, 0.0
        %v650 = vsel %vm627, %v632, 0.0
        %v651 = vsel %vm627, %v636, 0.0
        %v652 = vsel %vm627, %v640, 0.0
        %v653 = vsel %vm607, 1, 0
        %v654 = vsel %vm608, 1, 0
        %v655 = vsel %vm609, 1, 0
        %656 = vset.pattern.permute.xlu0 0
        %657 = vperm.xlu0 %656, %v653
        %v658 = vpop.permute.xlu0 %657
        %659 = vset.pattern.permute.xlu0 0
        %660 = vperm.xlu0 %659, %v654
        %v661 = vpop.permute.xlu0 %660
        %662 = vset.pattern.permute.xlu0 0
        %663 = vperm.xlu0 %662, %v655
        %v664 = vpop.permute.xlu0 %663
        %vm665 = vcmp.eq.s32.totalorder %v658, 1
        %vm666 = vcmp.eq.s32.totalorder %v661, 1
        %vm667 = vcmp.eq.s32.totalorder %v664, 1
        %v669 = vlaneseq
        %v670 = vshrl.u32 %v669, 7
        %v671 = vsub.s32 0, %v670
        %v672 = vrot.slane %v604, %v671
        %v673 = vlaneseq
        %v674 = vshrl.u32 %v673, 7
        %v675 = vsub.s32 1, %v674
        %v676 = vrot.slane %v604, %v675
        %v677 = vlaneseq
        %v678 = vshrl.u32 %v677, 7
        %v679 = vsub.s32 2, %v678
        %v680 = vrot.slane %v604, %v679
        %v684 = vsel %vm665, %v672, %v644
        %v685 = vsel %vm665, %v676, %v645
        %v686 = vsel %vm665, %v680, %v646
        %v687 = vsel %vm666, %v672, %v647
        %v688 = vsel %vm666, %v676, %v648
        %v689 = vsel %vm666, %v680, %v649
        %v690 = vsel %vm667, %v672, %v650
        %v691 = vsel %vm667, %v676, %v651
        %v692 = vsel %vm667, %v680, %v652
        %vm693 = vcmp.eq.s32.totalorder %v601, 2
        %vm694 = vcmp.eq.s32.totalorder %v602, 2
        %vm695 = vcmp.eq.s32.totalorder %v603, 2
        %v696 = vmul.f32 %v584, %v584
        %v697 = vmul.f32 %v586, %v586
        %v698 = vmul.f32 %v588, %v588
        %v699 = vmul.f32 %v590, %v590
        %v700 = vmul.f32 %v592, %v592
        %v701 = vmul.f32 %v594, %v594
        %v702 = vmul.f32 %v596, %v596
        %v703 = vmul.f32 %v598, %v598
        %v704 = vmul.f32 %v600, %v600
        %v705 = vsel %vm693, 1, 0
        %v706 = vsel %vm694, 1, 0
        %v707 = vsel %vm695, 1, 0
        %708 = vset.pattern.permute.xlu0 0
        %709 = vperm.xlu0 %708, %v705
        %v710 = vpop.permute.xlu0 %709
        %711 = vset.pattern.permute.xlu0 0
        %712 = vperm.xlu0 %711, %v706
        %v713 = vpop.permute.xlu0 %712
        %714 = vset.pattern.permute.xlu0 0
        %715 = vperm.xlu0 %714, %v707
        %v716 = vpop.permute.xlu0 %715
        %vm717 = vcmp.eq.s32.totalorder %v710, 1
        %vm718 = vcmp.eq.s32.totalorder %v713, 1
        %vm719 = vcmp.eq.s32.totalorder %v716, 1
        %v720 = vsel %vm717, %v696, %v584
        %v721 = vsel %vm717, %v697, %v586
        %v722 = vsel %vm717, %v698, %v588
        %v723 = vsel %vm718, %v699, %v590
        %v724 = vsel %vm718, %v700, %v592
        %v725 = vsel %vm718, %v701, %v594
        %v726 = vsel %vm719, %v702, %v596
        %v727 = vsel %vm719, %v703, %v598
        %v728 = vsel %vm719, %v704, %v600
        %v729 = vld [vmem:[%s3] sm:$0xff]
        %v730 = vld [vmem:[%s3 + $0x8] sm:$0xff]
        %v731 = vld [vmem:[%s3 + $0x10] sm:$0xff]
        %733 = vset.pattern.permute.xlu0 0
        %734 = vperm.xlu0 %733, %v729
        %v735 = vpop.permute.xlu0 %734
        %738 = vset.pattern.permute.xlu0 0
        %739 = vperm.xlu0 %738, %v730
        %v740 = vpop.permute.xlu0 %739
        %743 = vset.pattern.permute.xlu0 0
        %744 = vperm.xlu0 %743, %v731
        %v745 = vpop.permute.xlu0 %744
        %v747 = vmul.f32 %v720, %v735
        %v748 = vmul.f32 %v721, %v735
        %v749 = vmul.f32 %v722, %v735
        %v750 = vmul.f32 %v723, %v740
        %v751 = vmul.f32 %v724, %v740
        %v752 = vmul.f32 %v725, %v740
        %v753 = vmul.f32 %v726, %v745
        %v754 = vmul.f32 %v727, %v745
        %v755 = vmul.f32 %v728, %v745
        %v756 = vadd.f32 %v747, %v684
        %v757 = vadd.f32 %v748, %v685
        %v758 = vadd.f32 %v749, %v686
        %v759 = vadd.f32 %v750, %v687
        %v760 = vadd.f32 %v751, %v688
        %v761 = vadd.f32 %v752, %v689
        %v762 = vadd.f32 %v753, %v690
        %v763 = vadd.f32 %v754, %v691
        %v764 = vadd.f32 %v755, %v692
        %765 = vst [vmem:[%s322] sm:$0xff] %v756
        %766 = vst [vmem:[%s322 + $0x8] sm:$0xff] %v757
        %767 = vst [vmem:[%s322 + $0x10] sm:$0xff] %v758
        %768 = vst [vmem:[%s322 + $0x18] sm:$0xff] %v759
        %769 = vst [vmem:[%s322 + $0x20] sm:$0xff] %v760
        %770 = vst [vmem:[%s322 + $0x28] sm:$0xff] %v761
        %771 = vst [vmem:[%s322 + $0x30] sm:$0xff] %v762
        %772 = vst [vmem:[%s322 + $0x38] sm:$0xff] %v763
        %773 = vst [vmem:[%s322 + $0x40] sm:$0xff] %v764
        %s774 = sand.u32 %s183, 1
        %s775 = scalar_lea.sflag [#allocation4], %s774
        %s776 = sand.u32 %s183, 1
        %s777 = smul.addr %s776, 72
        %s778 = scalar_lea.vmem [#allocation5], %s777
        // Predicated region
        $region49: #{tpu_custom_call.1} parent=43 // pred_check
          %p779 = pneg %p193
        $region50: #{tpu_custom_call.1} parent=43 // pred_check_branch
          %781 = sbr.rel (%p779) target = $region52
        $region51: #{tpu_custom_call.1} parent=43 // pred_region
          %s782 = smul.u32 3, %s28
          %s783 = ssub.s32 4, %s782
          %p784 = scmp.lt.s32.totalorder %s783, 3
          %s785 = scalar_select %p784, %s783, 3
          %s786 = smul.u32 384, %s785
          %s788 = ssub.s32 1152, %s786
          %789 = vsyncadd %s775, %s788
          %p790 = scmp.ne.s32.totalorder 0, %s786
          %s791 = smul.addr %s27, 12
          %s792 = sadd.s32 %s782, %s791
          %s793 = smul.addr %s792, 128
          %s794 = scalar_lea.hbm %s6, %s793
          %s795 = smul.u32 %s785, 8
          %s796 = smul.u32 %s795, 3
          %s797 = sshll.u32 %s778, 4
          %s798 = int_to_ptr.vmem [resolvable:$true] %s797
          %s799 = sshll.u32 %s796, 4
          %803 = dma.vmem_to_hbm [thread:$0]  (%p790), %s798, %s799, %s794, %s775, 384, 512, %s795
        $region52: #{tpu_custom_call.1} parent=43 // pred_fallthru
          _
      $region44: #{tpu_custom_call.1} parent=5 // pred_fallthru
        _
      %p804 = scmp.le.s32.totalorder 2, %s18
      // Predicated region
      $region53: #{tpu_custom_call.1} parent=5 // pred_check
        %p805 = pneg %p804
      $region54: #{tpu_custom_call.1} parent=5 // pred_check_branch
        %807 = sbr.rel (%p805) target = $region56
      $region55: #{tpu_custom_call.1} parent=5 // pred_region
        %s808 = ssub.s32 %s18, 2
        // Predicated region
        $region57: #{tpu_custom_call.1} parent=55 // pred_check
          %p809 = pneg %p199
        $region58: #{tpu_custom_call.1} parent=55 // pred_check_branch
          %811 = sbr.rel (%p809) target = $region60
        $region59: #{tpu_custom_call.1} parent=55 // pred_region
          %s812 = sand.u32 %s184, 1
          %s813 = scalar_lea.sflag [#allocation4], %s812
          %s814 = sand.u32 %s184, 1
          %s815 = smul.addr %s814, 72
          %s816 = scalar_lea.vmem [#allocation5], %s815
          %817 = dma.done %s813, 1152
        $region60: #{tpu_custom_call.1} parent=55 // pred_fallthru
          _
      $region56: #{tpu_custom_call.1} parent=5 // pred_fallthru
        _
    $region6: #{tpu_custom_call.1} parent=1 // loop_footer
      %s22 = sadd.s32 1, %s18
    $region7: #{tpu_custom_call.1} parent=1 // loop_footer_branch
      %17 = sbr.rel target = $region3
    $region8: #{tpu_custom_call.1} parent=1 // loop_exit
      _
    %818 = vsyncpa [#allocation3], 1
    %s819 = scalar_lea.sflag [#allocation3], 1
    %820 = vsyncpa %s819, 1
    %821 = vsyncpa [#allocation4], 1
    %s822 = scalar_lea.sflag [#allocation4], 1
    %823 = vsyncpa %s822, 1

</llo_original>
